<compile_context>
chip_gen: v6e
topology: v6e:2x2x1
jax: 0.10.0
libtpu: 0.0.40
codegen_flags: <defaults>
</compile_context>

<pallas_src>
from collections import OrderedDict
import functools

import jax
import jax.numpy as jnp
from jax.experimental import pallas as pl
from jax.experimental.pallas import tpu as pltpu

_LANE = 128
_SUBLANE = 8
_MAX_BLOCK_ROWS = 1024                  # 1024x128 f32 block = 512 KiB (x2 buffers ~1 MiB)
_FUSED_VMEM_BUDGET = 4 * 1024 * 1024    # all loss tensors resident at once below this


# ----------------------------------------------------------------------------
# Tiled mean kernel (large tensors): big blocks + lane-dense accumulator.
# ----------------------------------------------------------------------------
def _make_mean_kernel(inv_count: float, block_rows: int):
    def _mean_kernel(x_ref, o_ref, acc_ref):
        i = pl.program_id(0)

        @pl.when(i == 0)
        def _():
            acc_ref[...] = jnp.zeros_like(acc_ref)

        # Cast in-kernel (HBM stays at source dtype).  Accumulate into a
        # vreg-shaped (8, 128) f32 accumulator: per-step work is full-width
        # VPU adds; the expensive cross-lane/sublane reduce runs once below.
        blk = x_ref[...].astype(jnp.float32)
        acc_ref[...] += blk.reshape(block_rows // _SUBLANE, _SUBLANE, _LANE).sum(axis=0)

        @pl.when(i == pl.num_programs(0) - 1)
        def _():
            o_ref[...] = jnp.sum(acc_ref[...], keepdims=True) * inv_count

    return _mean_kernel


def pallas_mean(x: jax.Array, *, max_block_rows: int = _MAX_BLOCK_ROWS) -> jax.Array:
    """Mean of an arbitrary-shaped array via a tiled Pallas reduction kernel."""
    n = int(x.size)
    if n == 0:
        raise ValueError("pallas_mean: empty tensor has no mean")

    flat = x.reshape(-1)                       # keep original dtype; cast in-kernel
    rows = (n + _LANE - 1) // _LANE
    rows8 = ((rows + _SUBLANE - 1) // _SUBLANE) * _SUBLANE
    block_rows = min(max_block_rows, rows8)
    block_rows = max(_SUBLANE, (block_rows // _SUBLANE) * _SUBLANE)
    rows_p = ((rows8 + block_rows - 1) // block_rows) * block_rows

    pad = rows_p * _LANE - n
    if pad:                                    # only the ragged tail is padded
        flat = jnp.pad(flat, (0, pad))
    x2 = flat.reshape(rows_p, _LANE)
    grid = (rows_p // block_rows,)

    out = pl.pallas_call(
        _make_mean_kernel(1.0 / n, block_rows),
        out_shape=jax.ShapeDtypeStruct((1, 1), jnp.float32),
        grid_spec=pltpu.PrefetchScalarGridSpec(
            num_scalar_prefetch=0,
            grid=grid,
            in_specs=[pl.BlockSpec((block_rows, _LANE), lambda i: (i, 0))],
            out_specs=pl.BlockSpec((1, 1), lambda i: (0, 0)),
            scratch_shapes=[pltpu.VMEM((_SUBLANE, _LANE), jnp.float32)],
        ),
        compiler_params=pltpu.CompilerParams(
            dimension_semantics=("arbitrary",),  # reduction axis: output resident
        ),
    )(x2)
    return out[0, 0]


# ----------------------------------------------------------------------------
# Fused kernel: all loss tensors -> all per-key means + total loss, one call.
# ----------------------------------------------------------------------------
def _make_fused_kernel(entries, num_slots, loss_slot_ids, float_loss_extra):
    # entries: list of (slot_id, inv_count), aligned with the kernel input refs.
    n_in = len(entries)

    def _fused_kernel(*refs):
        in_refs = refs[:n_in]
        out_ref = refs[n_in]

        slot_sums = [None] * num_slots
        for (slot, inv), r in zip(entries, in_refs):
            m = jnp.sum(r[...].astype(jnp.float32)) * inv
            slot_sums[slot] = m if slot_sums[slot] is None else slot_sums[slot] + m
        slot_sums = [jnp.float32(0.0) if s is None else s for s in slot_sums]

        total = jnp.float32(0.0)
        for s in loss_slot_ids:
            total = total + slot_sums[s]
        if float_loss_extra:
            total = total + jnp.float32(float_loss_extra)

        vals = slot_sums + [total]
        n_out = num_slots + 1
        lane = jax.lax.broadcasted_iota(jnp.int32, (1, n_out), 1)
        res = jnp.zeros((1, n_out), jnp.float32)
        for i, v in enumerate(vals):
            res = jnp.where(lane == i, v, res)
        out_ref[...] = res       # single lane-dense store

    return _fused_kernel


def _fused_slot_means(tensor_entries, num_slots, loss_slot_ids, float_loss_extra):
    arrays, entries, in_specs = [], [], []
    for slot, arr in tensor_entries:
        n = int(arr.size)
        flat = arr.reshape(-1)                 # keep source dtype; cast in-kernel
        pad = (-n) % _LANE
        if pad:                                # tiny tensors only; cheap
            flat = jnp.pad(flat, (0, pad))
        arrays.append(flat.reshape(-1, _LANE))
        entries.append((slot, 1.0 / n))
        in_specs.append(pl.BlockSpec(memory_space=pltpu.MemorySpace.VMEM))

    n_out = num_slots + 1
    return pl.pallas_call(
        _make_fused_kernel(entries, num_slots, loss_slot_ids, float_loss_extra),
        out_shape=jax.ShapeDtypeStruct((1, n_out), jnp.float32),
        in_specs=in_specs,
        out_specs=pl.BlockSpec(memory_space=pltpu.MemorySpace.VMEM),
    )(*arrays)


# ----------------------------------------------------------------------------
# JAX/Pallas equivalent of BasePose._parse_losses.
# ----------------------------------------------------------------------------
def parse_losses(losses, fused_vmem_budget_bytes=_FUSED_VMEM_BUDGET):
    """Returns (loss, log_vars): loss is a scalar jax array (or python number if
    the dict holds no tensors), log_vars maps names to python floats."""
    order = []
    keys = []                 # non-float keys, in slot order
    slot_of = {}
    tensor_entries = []       # (slot, array)
    float_entries = {}

    for loss_name, loss_value in losses.items():
        order.append(loss_name)
        if isinstance(loss_value, jax.Array):
            slot_of[loss_name] = len(keys)
            keys.append(loss_name)
            tensor_entries.append((slot_of[loss_name], loss_value))
        elif isinstance(loss_value, float):
            float_entries[loss_name] = loss_value
        elif isinstance(loss_value, (list, tuple)):
            slot_of[loss_name] = len(keys)
            keys.append(loss_name)
            for v in loss_value:
                tensor_entries.append((slot_of[loss_name], v))
        else:
            raise TypeError(
                f"{loss_name} is not a tensor or list of tensors or float")

    float_loss_extra = sum(v for k, v in float_entries.items() if "loss" in k)
    num_slots = len(keys)

    if num_slots == 0:        # no tensors at all
        log_vars = OrderedDict(losses)
        log_vars["loss"] = float_loss_extra
        return float_loss_extra, log_vars

    for _slot, arr in tensor_entries:
        if int(arr.size) == 0:
            raise ValueError("empty loss tensor: mean is undefined")

    loss_slot_ids = [i for i, k in enumerate(keys) if "loss" in k]
    total_bytes = sum(int(a.size) * a.dtype.itemsize for _s, a in tensor_entries)

    if total_bytes <= fused_vmem_budget_bytes:
        # One kernel launch for everything, one host transfer for log_vars.
        out = _fused_slot_means(tensor_entries, num_slots, loss_slot_ids,
                                float_loss_extra)
        loss = out[0, num_slots]                    # device scalar
        host = jax.device_get(out)                  # single blocking transfer
        slot_host = [float(host[0, i]) for i in range(num_slots)]
        total_host = float(host[0, num_slots])
    else:
        # Large tensors: tiled per-tensor reduction kernel; still one transfer.
        slot_vals = [None] * num_slots
        for slot, arr in tensor_entries:
            m = pallas_mean(arr)
            slot_vals[slot] = m if slot_vals[slot] is None else slot_vals[slot] + m
        slot_vals = [jnp.float32(0.0) if v is None else v for v in slot_vals]

        if loss_slot_ids:
            loss = functools.reduce(lambda a, b: a + b,
                                    [slot_vals[i] for i in loss_slot_ids])
            if float_loss_extra:
                loss = loss + float_loss_extra
        else:
            loss = jnp.float32(float_loss_extra)

        stacked = jnp.stack([jnp.float32(v) for v in slot_vals]
                            + [jnp.float32(loss)])
        host = jax.device_get(stacked)              # single blocking transfer
        slot_host = [float(host[i]) for i in range(num_slots)]
        total_host = float(host[num_slots])

    log_vars = OrderedDict()
    for name in order:
        if name in float_entries:
            log_vars[name] = float_entries[name]
        else:
            log_vars[name] = slot_host[slot_of[name]]
    log_vars["loss"] = total_host
    return loss, log_vars


if __name__ == "__main__":
    key = jax.random.PRNGKey(0)
    k1, k2, k3, k4, k5 = jax.random.split(key, 5)

    # Synthetic raw network outputs, as a pose-detector forward_train would emit.
    losses = {
        "heatmap_loss": jax.random.normal(k1, (2, 4, 16, 16), jnp.float32),
        "reg_loss": [
            jax.random.normal(k2, (8, 32), jnp.float32),
            jax.random.normal(k3, (8, 32), jnp.float32),
        ],
        "acc_pose": jax.random.uniform(k4, (2,), jnp.float32),
        "lr": 1e-3,  # plain float entry
    }

    # Reference (same semantics as the torch implementation).
    ref_vars = OrderedDict()
    ref_vars["heatmap_loss"] = float(jnp.mean(losses["heatmap_loss"]))
    ref_vars["reg_loss"] = float(sum(jnp.mean(v) for v in losses["reg_loss"]))
    ref_vars["acc_pose"] = float(jnp.mean(losses["acc_pose"]))
    ref_loss = ref_vars["heatmap_loss"] + ref_vars["reg_loss"]

    # 1) Fused single-kernel path (typical loss dict).
    loss, log_vars = parse_losses(losses)
    loss = jax.block_until_ready(loss)
    assert abs(float(loss) - ref_loss) < 1e-5, (float(loss), ref_loss)
    for name in ("heatmap_loss", "reg_loss", "acc_pose"):
        assert abs(log_vars[name] - ref_vars[name]) < 1e-5, name
    assert abs(log_vars["loss"] - ref_loss) < 1e-5
    assert log_vars["lr"] == 1e-3

    # 2) Force the tiled per-tensor fallback path (budget = 0 bytes).
    loss2, log_vars2 = parse_losses(losses, fused_vmem_budget_bytes=0)
    loss2 = jax.block_until_ready(loss2)
    assert abs(float(loss2) - ref_loss) < 1e-5, (float(loss2), ref_loss)
    for name in ("heatmap_loss", "reg_loss", "acc_pose"):
        assert abs(log_vars2[name] - ref_vars[name]) < 1e-5, name

    # 3) Tiled kernel with grid > 1 and bf16 HBM dtype (cast happens in-kernel).
    big = jax.random.normal(k5, (40, 333), jnp.float32).astype(jnp.bfloat16)
    m = jax.block_until_ready(pallas_mean(big, max_block_rows=64))
    ref_m = float(jnp.mean(big.astype(jnp.float32)))
    assert abs(float(m) - ref_m) < 1e-4, (float(m), ref_m)

    print("KERNEL_OK")
</pallas_src>

<mosaic_0001>
module attributes {stable_mosaic.version = 11 : i64} {
  func.func @_fused_kernel(%arg0: memref<16x128xf32, #tpu.memory_space<vmem>>, %arg1: memref<2x128xf32, #tpu.memory_space<vmem>>, %arg2: memref<2x128xf32, #tpu.memory_space<vmem>>, %arg3: memref<1x128xf32, #tpu.memory_space<vmem>>, %arg4: memref<1x4xf32, #tpu.memory_space<vmem>>) attributes {dimension_semantics = [], scalar_prefetch = 0 : i64, scratch_operands = 0 : i64, tpu.core_type = #tpu.core_type<tc>} {
    %c0 = arith.constant 0 : index
    %c0_0 = arith.constant 0 : index
    %0 = vector.load %arg0[%c0, %c0_0] : memref<16x128xf32, #tpu.memory_space<vmem>>, vector<16x128xf32>
    %1 = vector.shape_cast %0 : vector<16x128xf32> to vector<1x16x128xf32>
    %cst = arith.constant dense<0.000000e+00> : vector<1xf32>
    %2 = vector.multi_reduction <add>, %1, %cst [1, 2] : vector<1x16x128xf32> to vector<1xf32>
    %3 = vector.shape_cast %2 : vector<1xf32> to vector<1x1x1xf32>
    %4 = vector.extract %3[0, 0, 0] : f32 from vector<1x1x1xf32>
    %cst_1 = arith.constant 4.8828125E-4 : f32
    %5 = arith.mulf %4, %cst_1 : f32
    %c0_2 = arith.constant 0 : index
    %c0_3 = arith.constant 0 : index
    %6 = vector.load %arg1[%c0_2, %c0_3] : memref<2x128xf32, #tpu.memory_space<vmem>>, vector<2x128xf32>
    %7 = vector.shape_cast %6 : vector<2x128xf32> to vector<1x2x128xf32>
    %cst_4 = arith.constant dense<0.000000e+00> : vector<1xf32>
    %8 = vector.multi_reduction <add>, %7, %cst_4 [1, 2] : vector<1x2x128xf32> to vector<1xf32>
    %9 = vector.shape_cast %8 : vector<1xf32> to vector<1x1x1xf32>
    %10 = vector.extract %9[0, 0, 0] : f32 from vector<1x1x1xf32>
    %cst_5 = arith.constant 3.906250e-03 : f32
    %11 = arith.mulf %10, %cst_5 : f32
    %c0_6 = arith.constant 0 : index
    %c0_7 = arith.constant 0 : index
    %12 = vector.load %arg2[%c0_6, %c0_7] : memref<2x128xf32, #tpu.memory_space<vmem>>, vector<2x128xf32>
    %13 = vector.shape_cast %12 : vector<2x128xf32> to vector<1x2x128xf32>
    %cst_8 = arith.constant dense<0.000000e+00> : vector<1xf32>
    %14 = vector.multi_reduction <add>, %13, %cst_8 [1, 2] : vector<1x2x128xf32> to vector<1xf32>
    %15 = vector.shape_cast %14 : vector<1xf32> to vector<1x1x1xf32>
    %16 = vector.extract %15[0, 0, 0] : f32 from vector<1x1x1xf32>
    %cst_9 = arith.constant 3.906250e-03 : f32
    %17 = arith.mulf %16, %cst_9 : f32
    %18 = arith.addf %11, %17 : f32
    %c0_10 = arith.constant 0 : index
    %c0_11 = arith.constant 0 : index
    %19 = vector.load %arg3[%c0_10, %c0_11] : memref<1x128xf32, #tpu.memory_space<vmem>>, vector<1x128xf32>
    %20 = vector.shape_cast %19 : vector<1x128xf32> to vector<1x1x128xf32>
    %cst_12 = arith.constant dense<0.000000e+00> : vector<1xf32>
    %21 = vector.multi_reduction <add>, %20, %cst_12 [1, 2] : vector<1x1x128xf32> to vector<1xf32>
    %22 = vector.shape_cast %21 : vector<1xf32> to vector<1x1x1xf32>
    %23 = vector.extract %22[0, 0, 0] : f32 from vector<1x1x1xf32>
    %cst_13 = arith.constant 5.000000e-01 : f32
    %24 = arith.mulf %23, %cst_13 : f32
    %cst_14 = arith.constant 0.000000e+00 : f32
    %25 = arith.addf %cst_14, %5 : f32
    %26 = arith.addf %25, %18 : f32
    %27 = tpu.iota {dimensions = array<i32: 1>} : vector<1x4xi32>
    %cst_15 = arith.constant 0.000000e+00 : f32
    %28 = vector.broadcast %cst_15 : f32 to vector<1x4xf32>
    %c0_i32 = arith.constant 0 : i32
    %29 = vector.broadcast %c0_i32 : i32 to vector<1x4xi32>
    %30 = arith.cmpi eq, %27, %29 : vector<1x4xi32>
    %31 = vector.broadcast %5 : f32 to vector<1x4xf32>
    %32 = arith.select %30, %31, %28 : vector<1x4xi1>, vector<1x4xf32>
    %c1_i32 = arith.constant 1 : i32
    %33 = vector.broadcast %c1_i32 : i32 to vector<1x4xi32>
    %34 = arith.cmpi eq, %27, %33 : vector<1x4xi32>
    %35 = vector.broadcast %18 : f32 to vector<1x4xf32>
    %36 = arith.select %34, %35, %32 : vector<1x4xi1>, vector<1x4xf32>
    %c2_i32 = arith.constant 2 : i32
    %37 = vector.broadcast %c2_i32 : i32 to vector<1x4xi32>
    %38 = arith.cmpi eq, %27, %37 : vector<1x4xi32>
    %39 = vector.broadcast %24 : f32 to vector<1x4xf32>
    %40 = arith.select %38, %39, %36 : vector<1x4xi1>, vector<1x4xf32>
    %c3_i32 = arith.constant 3 : i32
    %41 = vector.broadcast %c3_i32 : i32 to vector<1x4xi32>
    %42 = arith.cmpi eq, %27, %41 : vector<1x4xi32>
    %43 = vector.broadcast %26 : f32 to vector<1x4xf32>
    %44 = arith.select %42, %43, %40 : vector<1x4xi1>, vector<1x4xf32>
    %c0_16 = arith.constant 0 : index
    %c0_17 = arith.constant 0 : index
    %45 = vector.load %arg4[%c0_16, %c0_17] : memref<1x4xf32, #tpu.memory_space<vmem>>, vector<1x4xf32>
    tpu.vector_store %arg4[%c0_16, %c0_17], %44 {strides = array<i32>} : memref<1x4xf32, #tpu.memory_space<vmem>>, vector<1x4xf32>,
    return
  }
}

</mosaic_0001>

<llo_original>
// kernel: tpu_custom_call.1
$region0: #{tpu_custom_call.1}
  #allocation0 [shape = 'u32[]', space=smem, size = 0x4, offset = 0x4, fixed_abs, tag = 'smem constant byte address 0x4 - core index']
  #allocation1 [shape = 'u32[144,128]{1,0:T(1,128)}', space=vmem, size = 0x12000, scoped, tag = 'internal scratch']
  %s0 = inlined_call_operand.hbm [shape: f32[16,128], index: 0, kind: input, shape index: {}]
  %s1 = inlined_call_operand.hbm [shape: f32[2,128], index: 1, kind: input, shape index: {}]
  %s2 = inlined_call_operand.vmem [shape: f32[2,128], index: 2, kind: input, shape index: {}]
  %s3 = inlined_call_operand.vmem [shape: f32[1,128], index: 3, kind: input, shape index: {}]
  %s4 = inlined_call_operand.hbm [shape: f32[1,4], index: 4, kind: output, shape index: {}]
  %s5 = sld [smem:[#allocation0]]
  $region34: #{tpu_custom_call.1} parent=0
    _
  %s7 = ssub.s32 1, %s5
  %s8 = scalar_select 0, %s7, %s5
  $region1: #{tpu_custom_call.1} parent=0
    #allocation2 [shape = 'u8[8192]{0}', space=vmem, size = 0x2000, scoped, tag = 'input window, operand 0, single buffered']
    #allocation3 [shape = 's32[1]{0}', space=sflag, size = 0x4, scoped, tag = 'scoped memory for tpu_custom_call.1']
    #allocation4 [shape = 's32[1]{0}', space=sflag, size = 0x4, scoped, tag = 'scoped memory for tpu_custom_call.1']
    #allocation5 [shape = 'u8[1024]{0}', space=vmem, size = 0x400, scoped, tag = 'input window, operand 1, single buffered']
    #allocation6 [shape = 's32[1]{0}', space=sflag, size = 0x4, scoped, tag = 'scoped memory for tpu_custom_call.1']
    #allocation7 [shape = 'u8[512]{0}', space=vmem, size = 0x400, scoped, tag = 'output window, operand 0, single buffered']
    %9 = vsyncpa [#allocation3], 0
    %10 = vsyncpa [#allocation6], 0
    %11 = vsyncpa [#allocation4], 0
    // Predicated region
    $region2: #{tpu_custom_call.1} parent=1 // pred_check
      _
    $region3: #{tpu_custom_call.1} parent=1 // pred_check_branch
      %13 = sbr.rel (0) target = $region5
    $region4: #{tpu_custom_call.1} parent=1 // pred_region
      %s15 = ssub.s32 256, 256
      %16 = vsyncadd [#allocation3], %s15
      %s17 = sshll.u32 [#allocation2], 4
      %s18 = int_to_ptr.vmem [resolvable:$true] %s17
      %23 = dma.hbm_to_vmem [thread:$0]  %s0, 256, %s18, [#allocation3], 128, 128, 8
    $region5: #{tpu_custom_call.1} parent=1 // pred_fallthru
      _
    // Predicated region
    $region6: #{tpu_custom_call.1} parent=1 // pred_check
      _
    $region7: #{tpu_custom_call.1} parent=1 // pred_check_branch
      %25 = sbr.rel (0) target = $region9
    $region8: #{tpu_custom_call.1} parent=1 // pred_region
      %s27 = ssub.s32 32, 32
      %28 = vsyncadd [#allocation6], %s27
      %s30 = sshll.u32 [#allocation5], 4
      %s31 = int_to_ptr.vmem [resolvable:$true] %s30
      %33 = dma.hbm_to_vmem [thread:$0]  %s1, 32, %s31, [#allocation6]
    $region9: #{tpu_custom_call.1} parent=1 // pred_fallthru
      _
    // Predicated region
    $region10: #{tpu_custom_call.1} parent=1 // pred_check
      _
    $region11: #{tpu_custom_call.1} parent=1 // pred_check_branch
      %35 = sbr.rel (0) target = $region13
    $region12: #{tpu_custom_call.1} parent=1 // pred_region
      _
    $region13: #{tpu_custom_call.1} parent=1 // pred_fallthru
      _
    // Predicated region
    $region14: #{tpu_custom_call.1} parent=1 // pred_check
      _
    $region15: #{tpu_custom_call.1} parent=1 // pred_check_branch
      %37 = sbr.rel (0) target = $region17
    $region16: #{tpu_custom_call.1} parent=1 // pred_region
      _
    $region17: #{tpu_custom_call.1} parent=1 // pred_fallthru
      _
    // Predicated region
    $region18: #{tpu_custom_call.1} parent=1 // pred_check
      _
    $region19: #{tpu_custom_call.1} parent=1 // pred_check_branch
      %39 = sbr.rel (0) target = $region21
    $region20: #{tpu_custom_call.1} parent=1 // pred_region
      %40 = dma.done [#allocation3], 256
    $region21: #{tpu_custom_call.1} parent=1 // pred_fallthru
      _
    // Predicated region
    $region22: #{tpu_custom_call.1} parent=1 // pred_check
      _
    $region23: #{tpu_custom_call.1} parent=1 // pred_check_branch
      %42 = sbr.rel (0) target = $region25
    $region24: #{tpu_custom_call.1} parent=1 // pred_region
      %43 = dma.done [#allocation6], 32
    $region25: #{tpu_custom_call.1} parent=1 // pred_fallthru
      _
    %v44 = vld [vmem:[#allocation2] sm:$0xff]
    %v45 = vld [vmem:[#allocation2 + $0x8] sm:$0xff]
    %v46 = vadd.f32 %v44, %v45
    %47 = vadd.xlane.f32.xlu0 %v46
    %v48 = vpop.xlane.xlu0 %47
    %v49 = vrot.slane %v48, 4
    %v50 = vadd.f32 %v48, %v49
    %v51 = vrot.slane %v50, 2
    %v52 = vadd.f32 %v50, %v51
    %v53 = vrot.slane %v52, 1
    %v54 = vadd.f32 %v52, %v53
    %s55 = vtos %v54
    %s56 = smul.f32 %s55, 0.00048828125
    %v57 = vld [vmem:[#allocation5] sm:$0x3]
    %vm58 = vcmask 1041408
    %v59 = vsel %vm58, %v57, 0.0
    %60 = vadd.xlane.f32.xlu0 %v59
    %v61 = vpop.xlane.xlu0 %60
    %v62 = vrot.slane %v61, 4
    %v63 = vadd.f32 %v61, %v62
    %v64 = vrot.slane %v63, 2
    %v65 = vadd.f32 %v63, %v64
    %v66 = vrot.slane %v65, 1
    %v67 = vadd.f32 %v65, %v66
    %s68 = vtos %v67
    %s69 = smul.f32 %s68, 0.00390625
    %v70 = vld [vmem:[%s2] sm:$0x3]
    %v71 = vsel %vm58, %v70, 0.0
    %72 = vadd.xlane.f32.xlu0 %v71
    %v73 = vpop.xlane.xlu0 %72
    %v74 = vrot.slane %v73, 4
    %v75 = vadd.f32 %v73, %v74
    %v76 = vrot.slane %v75, 2
    %v77 = vadd.f32 %v75, %v76
    %v78 = vrot.slane %v77, 1
    %v79 = vadd.f32 %v77, %v78
    %s80 = vtos %v79
    %s81 = smul.f32 %s80, 0.00390625
    %s82 = sadd.f32 %s69, %s81
    %v83 = vld [vmem:[%s3] sm:$0x1]
    %vm84 = vcmask 1040384
    %v85 = vsel %vm84, %v83, 0.0
    %86 = vadd.xlane.f32.xlu0 %v85
    %v87 = vpop.xlane.xlu0 %86
    %v88 = vrot.slane %v87, 4
    %v89 = vadd.f32 %v87, %v88
    %v90 = vrot.slane %v89, 2
    %v91 = vadd.f32 %v89, %v90
    %v92 = vrot.slane %v91, 1
    %v93 = vadd.f32 %v91, %v92
    %s94 = vtos %v93
    %s95 = smul.f32 %s94, 0.5
    %s96 = sadd.f32 %s56, 0.0
    %s97 = sadd.f32 %s96, %s82
    %v98 = vlaneseq
    %v99 = vand.u32 %v98, 127
    %vm100 = vcmp.eq.s32.totalorder %v99, 0
    %v101 = vstv %s56
    %v102 = vsel %vm100, %v101, 0.0
    %vm103 = vcmp.eq.s32.totalorder %v99, 1
    %v104 = vstv %s82
    %v105 = vsel %vm103, %v104, %v102
    %vm106 = vcmp.eq.s32.totalorder %v99, 2
    %v107 = vstv %s95
    %v108 = vsel %vm106, %v107, %v105
    %vm109 = vcmp.eq.s32.totalorder %v99, 3
    %v110 = vstv %s97
    %v111 = vsel %vm109, %v110, %v108
    %vm112 = vcmask 24576
    %113 = vst.msk [vmem:[#allocation7] sm:$0x1] %vm112, %v111
    // Predicated region
    $region26: #{tpu_custom_call.1} parent=1 // pred_check
      _
    $region27: #{tpu_custom_call.1} parent=1 // pred_check_branch
      %115 = sbr.rel (0) target = $region29
    $region28: #{tpu_custom_call.1} parent=1 // pred_region
      %s117 = ssub.s32 16, 16
      %118 = vsyncadd [#allocation4], %s117
      %s120 = sshll.u32 [#allocation7], 4
      %s121 = int_to_ptr.vmem [resolvable:$true] %s120
      %123 = dma.vmem_to_hbm [thread:$0]  %s121, 16, %s4, [#allocation4]
    $region29: #{tpu_custom_call.1} parent=1 // pred_fallthru
      _
    // Predicated region
    $region30: #{tpu_custom_call.1} parent=1 // pred_check
      _
    $region31: #{tpu_custom_call.1} parent=1 // pred_check_branch
      %125 = sbr.rel (0) target = $region33
    $region32: #{tpu_custom_call.1} parent=1 // pred_region
      %126 = dma.done [#allocation4], 16
    $region33: #{tpu_custom_call.1} parent=1 // pred_fallthru
      _
    %127 = vsyncpa [#allocation3], 1
    %128 = vsyncpa [#allocation6], 1
    %129 = vsyncpa [#allocation4], 1

</llo_original>
